<compile_context>
chip_gen: v7x
topology: tpu7x:2x2x1
jax: 0.10.0
libtpu: 0.0.40
codegen_flags: <defaults>
</compile_context>

<pallas_src>
import jax
import jax.numpy as jnp
from jax.experimental import pallas as pl
from jax.experimental.pallas import tpu as pltpu

_LANE = 128
_SUB = 8
_VREG_BATCH = _LANE * _SUB           # 1024 samples per full vreg
_MAX_TILE_LANES = 32 * 1024          # 32768 lane-columns = 256K samples / tile
                                     # -> ~4 MiB/step DMA, ~8 MiB double-buffered


def _mlp_kernel(w1_ref, w2_ref, xt_ref, out_ref):
    # w1_ref : (3, 3) f32 in SMEM   (PyTorch layout: [out_feat, in_feat])
    # w2_ref : (3,)   f32 in SMEM   (flattened second-layer weights)
    # xt_ref : (24, tbc) f32 in VMEM; rows [8j, 8j+8) hold feature j,
    #          batch occupies every (sublane, lane) slot.
    # out_ref: (8, tbc) f32 in VMEM (lane- and sublane-dense output slab)
    x0 = xt_ref[0:8, :]
    x1 = xt_ref[8:16, :]
    x2 = xt_ref[16:24, :]

    y = None
    # Unrolled over the 3 hidden units: full-occupancy VPU FMAs + relu.
    for k in range(3):
        h = w1_ref[k, 0] * x0 + w1_ref[k, 1] * x1 + w1_ref[k, 2] * x2
        h = jnp.maximum(h, 0.0)
        term = w2_ref[k] * h
        y = term if y is None else y + term

    out_ref[...] = y


def _round_up(n, m):
    return ((n + m - 1) // m) * m


def _simple_nn_forward(x, w1, w2):
    """x: (B, 3) f32, w1: (3, 3) f32, w2: (1, 3) f32 -> (B, 1) f32."""
    B = x.shape[0]

    # Pad batch only to one full vreg (1024 samples); ragged last grid block
    # is handled by Pallas boundary masking -- no tile-multiple padding waste.
    b_pad = _round_up(max(B, 1), _VREG_BATCH)
    bc = b_pad // _SUB                         # lane-columns (multiple of 128)
    tbc = min(_MAX_TILE_LANES, bc)             # tile width, multiple of 128
    grid = pl.cdiv(bc, tbc)

    # Layout plumbing (inside the jit, fusable): sample b -> (col b//8, sub b%8),
    # feature j -> sublanes [8j, 8j+8).
    x_p = jnp.pad(x.astype(jnp.float32), ((0, b_pad - B), (0, 0)))   # (b_pad, 3)
    xt = x_p.reshape(bc, _SUB, 3).transpose(2, 1, 0).reshape(3 * _SUB, bc)

    w1 = w1.astype(jnp.float32)
    w2_flat = w2.reshape(3).astype(jnp.float32)

    out_t = pl.pallas_call(
        _mlp_kernel,
        out_shape=jax.ShapeDtypeStruct((_SUB, bc), jnp.float32),
        grid=(grid,),
        in_specs=[
            pl.BlockSpec(memory_space=pltpu.MemorySpace.SMEM),     # w1 scalars
            pl.BlockSpec(memory_space=pltpu.MemorySpace.SMEM),     # w2 scalars
            pl.BlockSpec((3 * _SUB, tbc), lambda i: (0, i)),       # x batch tile
        ],
        out_specs=pl.BlockSpec((_SUB, tbc), lambda i: (0, i)),
        compiler_params=pltpu.CompilerParams(
            dimension_semantics=("parallel",),
            vmem_limit_bytes=32 * 1024 * 1024),
    )(w1, w2_flat, xt)

    # Inverse of the input batch split: (8, bc) -> (bc, 8) -> flat batch.
    # TODO(synk): accepting/producing the (24, Bc)/(8, Bc) layout upstream would
    # remove this extra (fused) layout pass entirely.
    y = out_t.transpose(1, 0).reshape(b_pad)[:B].reshape(B, 1)
    return y


simple_nn_forward = jax.jit(_simple_nn_forward)


def _reference(x, w1, w2):
    return jnp.maximum(x @ w1.T, 0.0) @ w2.T


if __name__ == "__main__":
    key = jax.random.PRNGKey(0)
    kx, k1, k2, kx2 = jax.random.split(key, 4)

    # PyTorch Linear weight shapes: (out_features, in_features)
    w1 = jax.random.normal(k1, (3, 3), dtype=jnp.float32) * 0.5
    w2 = jax.random.normal(k2, (1, 3), dtype=jnp.float32) * 0.5

    # Primary small-batch run.
    batch = 8
    x = jax.random.normal(kx, (batch, 3), dtype=jnp.float32)
    out = jax.block_until_ready(simple_nn_forward(x, w1, w2))
    ref = _reference(x, w1, w2)
    assert out.shape == (batch, 1)
    assert jnp.allclose(out, ref, atol=1e-5, rtol=1e-5)

    # Secondary run exercising the padding / sublane+lane packing path
    # (batch not a multiple of 1024).
    batch2 = 300
    x2 = jax.random.normal(kx2, (batch2, 3), dtype=jnp.float32)
    out2 = jax.block_until_ready(simple_nn_forward(x2, w1, w2))
    ref2 = _reference(x2, w1, w2)
    assert out2.shape == (batch2, 1)
    assert jnp.allclose(out2, ref2, atol=1e-5, rtol=1e-5)

    print("KERNEL_OK")
</pallas_src>

<mosaic_0001>
module attributes {stable_mosaic.version = 11 : i64} {
  func.func @_mlp_kernel(%arg0: i32, %arg1: memref<3x3xf32, #tpu.memory_space<smem>>, %arg2: memref<3xf32, #tpu.memory_space<smem>>, %arg3: memref<24x128xf32, #tpu.memory_space<vmem>>, %arg4: memref<8x128xf32, #tpu.memory_space<vmem>>) attributes {dimension_semantics = [#tpu.dimension_semantics<parallel>], iteration_bounds = array<i64: 1>, scalar_prefetch = 0 : i64, scratch_operands = 0 : i64, tpu.core_type = #tpu.core_type<tc>, window_params = [{transform_indices = @transform_0, window_bounds = array<i64: 3, 3>}, {transform_indices = @transform_1, window_bounds = array<i64: 3>}, {transform_indices = @transform_2, window_bounds = array<i64: 24, 128>}, {transform_indices = @transform_3, window_bounds = array<i64: 8, 128>}]} {
    %c0 = arith.constant 0 : index
    %c0_0 = arith.constant 0 : index
    %0 = vector.load %arg3[%c0, %c0_0] : memref<24x128xf32, #tpu.memory_space<vmem>>, vector<8x128xf32>
    %c8 = arith.constant 8 : index
    %c0_1 = arith.constant 0 : index
    %1 = vector.load %arg3[%c8, %c0_1] : memref<24x128xf32, #tpu.memory_space<vmem>>, vector<8x128xf32>
    %c16 = arith.constant 16 : index
    %c0_2 = arith.constant 0 : index
    %2 = vector.load %arg3[%c16, %c0_2] : memref<24x128xf32, #tpu.memory_space<vmem>>, vector<8x128xf32>
    %c0_3 = arith.constant 0 : index
    %c0_4 = arith.constant 0 : index
    %3 = memref.load %arg1[%c0_3, %c0_4] : memref<3x3xf32, #tpu.memory_space<smem>>
    %4 = vector.broadcast %3 : f32 to vector<8x128xf32>
    %5 = arith.mulf %4, %0 : vector<8x128xf32>
    %c0_5 = arith.constant 0 : index
    %c1 = arith.constant 1 : index
    %6 = memref.load %arg1[%c0_5, %c1] : memref<3x3xf32, #tpu.memory_space<smem>>
    %7 = vector.broadcast %6 : f32 to vector<8x128xf32>
    %8 = arith.mulf %7, %1 : vector<8x128xf32>
    %9 = arith.addf %5, %8 : vector<8x128xf32>
    %c0_6 = arith.constant 0 : index
    %c2 = arith.constant 2 : index
    %10 = memref.load %arg1[%c0_6, %c2] : memref<3x3xf32, #tpu.memory_space<smem>>
    %11 = vector.broadcast %10 : f32 to vector<8x128xf32>
    %12 = arith.mulf %11, %2 : vector<8x128xf32>
    %13 = arith.addf %9, %12 : vector<8x128xf32>
    %cst = arith.constant 0.000000e+00 : f32
    %14 = vector.broadcast %cst : f32 to vector<8x128xf32>
    %15 = arith.maximumf %13, %14 : vector<8x128xf32>
    %c0_7 = arith.constant 0 : index
    %16 = memref.load %arg2[%c0_7] : memref<3xf32, #tpu.memory_space<smem>>
    %17 = vector.broadcast %16 : f32 to vector<8x128xf32>
    %18 = arith.mulf %17, %15 : vector<8x128xf32>
    %c1_8 = arith.constant 1 : index
    %c0_9 = arith.constant 0 : index
    %19 = memref.load %arg1[%c1_8, %c0_9] : memref<3x3xf32, #tpu.memory_space<smem>>
    %20 = vector.broadcast %19 : f32 to vector<8x128xf32>
    %21 = arith.mulf %20, %0 : vector<8x128xf32>
    %c1_10 = arith.constant 1 : index
    %c1_11 = arith.constant 1 : index
    %22 = memref.load %arg1[%c1_10, %c1_11] : memref<3x3xf32, #tpu.memory_space<smem>>
    %23 = vector.broadcast %22 : f32 to vector<8x128xf32>
    %24 = arith.mulf %23, %1 : vector<8x128xf32>
    %25 = arith.addf %21, %24 : vector<8x128xf32>
    %c1_12 = arith.constant 1 : index
    %c2_13 = arith.constant 2 : index
    %26 = memref.load %arg1[%c1_12, %c2_13] : memref<3x3xf32, #tpu.memory_space<smem>>
    %27 = vector.broadcast %26 : f32 to vector<8x128xf32>
    %28 = arith.mulf %27, %2 : vector<8x128xf32>
    %29 = arith.addf %25, %28 : vector<8x128xf32>
    %cst_14 = arith.constant 0.000000e+00 : f32
    %30 = vector.broadcast %cst_14 : f32 to vector<8x128xf32>
    %31 = arith.maximumf %29, %30 : vector<8x128xf32>
    %c1_15 = arith.constant 1 : index
    %32 = memref.load %arg2[%c1_15] : memref<3xf32, #tpu.memory_space<smem>>
    %33 = vector.broadcast %32 : f32 to vector<8x128xf32>
    %34 = arith.mulf %33, %31 : vector<8x128xf32>
    %35 = arith.addf %18, %34 : vector<8x128xf32>
    %c2_16 = arith.constant 2 : index
    %c0_17 = arith.constant 0 : index
    %36 = memref.load %arg1[%c2_16, %c0_17] : memref<3x3xf32, #tpu.memory_space<smem>>
    %37 = vector.broadcast %36 : f32 to vector<8x128xf32>
    %38 = arith.mulf %37, %0 : vector<8x128xf32>
    %c2_18 = arith.constant 2 : index
    %c1_19 = arith.constant 1 : index
    %39 = memref.load %arg1[%c2_18, %c1_19] : memref<3x3xf32, #tpu.memory_space<smem>>
    %40 = vector.broadcast %39 : f32 to vector<8x128xf32>
    %41 = arith.mulf %40, %1 : vector<8x128xf32>
    %42 = arith.addf %38, %41 : vector<8x128xf32>
    %c2_20 = arith.constant 2 : index
    %c2_21 = arith.constant 2 : index
    %43 = memref.load %arg1[%c2_20, %c2_21] : memref<3x3xf32, #tpu.memory_space<smem>>
    %44 = vector.broadcast %43 : f32 to vector<8x128xf32>
    %45 = arith.mulf %44, %2 : vector<8x128xf32>
    %46 = arith.addf %42, %45 : vector<8x128xf32>
    %cst_22 = arith.constant 0.000000e+00 : f32
    %47 = vector.broadcast %cst_22 : f32 to vector<8x128xf32>
    %48 = arith.maximumf %46, %47 : vector<8x128xf32>
    %c2_23 = arith.constant 2 : index
    %49 = memref.load %arg2[%c2_23] : memref<3xf32, #tpu.memory_space<smem>>
    %50 = vector.broadcast %49 : f32 to vector<8x128xf32>
    %51 = arith.mulf %50, %48 : vector<8x128xf32>
    %52 = arith.addf %35, %51 : vector<8x128xf32>
    %c0_24 = arith.constant 0 : index
    %c0_25 = arith.constant 0 : index
    %53 = vector.load %arg4[%c0_24, %c0_25] : memref<8x128xf32, #tpu.memory_space<vmem>>, vector<8x128xf32>
    tpu.vector_store %arg4[%c0_24, %c0_25], %52 {strides = array<i32>} : memref<8x128xf32, #tpu.memory_space<vmem>>, vector<8x128xf32>,
    return
  }
  func.func @transform_0(%arg0: i32) -> (i32, i32) {
    %c0_i32 = arith.constant 0 : i32
    %c0_i32_0 = arith.constant 0 : i32
    %c0_i32_1 = arith.constant 0 : i32
    return %c0_i32, %c0_i32_0 : i32, i32
  }
  func.func @transform_1(%arg0: i32) -> i32 {
    %c0_i32 = arith.constant 0 : i32
    %c0_i32_0 = arith.constant 0 : i32
    return %c0_i32 : i32
  }
  func.func @transform_2(%arg0: i32) -> (i32, i32) {
    %c0_i32 = arith.constant 0 : i32
    %c0_i32_0 = arith.constant 0 : i32
    return %c0_i32, %arg0 : i32, i32
  }
  func.func @transform_3(%arg0: i32) -> (i32, i32) {
    %c0_i32 = arith.constant 0 : i32
    %c0_i32_0 = arith.constant 0 : i32
    return %c0_i32, %arg0 : i32, i32
  }
}

</mosaic_0001>

<llo_original>
// kernel: _simple_nn_forward.1
$region0: #{_simple_nn_forward.1}
  #allocation0 [shape = 'u32[]', space=smem, size = 0x4, offset = 0x4, fixed_abs, tag = 'smem constant byte address 0x4 - core index']
  #allocation1 [shape = 'u32[144,128]{1,0:T(1,128)}', space=vmem, size = 0x12000, scoped, tag = 'internal scratch']
  %s0 = inlined_call_operand.vmem [shape: f32[3,3], index: 0, kind: input, shape index: {}]
  %s1 = inlined_call_operand.vmem [shape: f32[3], index: 1, kind: input, shape index: {}]
  %s2 = inlined_call_operand.vmem [shape: f32[24,128], index: 2, kind: input, shape index: {}]
  %s3 = inlined_call_operand.vmem [shape: f32[8,128], index: 3, kind: output, shape index: {}]
  %s4 = sld [smem:[#allocation0]]
  $region30: #{_simple_nn_forward.1} parent=0
    _
  %s6 = ssub.s32 1, %s4
  %s7 = scalar_select 0, %s6, %s4
  $region1: #{_simple_nn_forward.1} parent=0
    #allocation2 [shape = 'u8[2048]{0}', space=smem, size = 0x800, scoped, tag = 'input window, operand 0, single buffered']
    #allocation3 [shape = 's32[1]{0}', space=sflag, size = 0x4, scoped, tag = 'scoped memory for _simple_nn_forward.1']
    #allocation4 [shape = 'u8[512]{0}', space=smem, size = 0x200, scoped, tag = 'input window, operand 1, single buffered']
    #allocation5 [shape = 's32[1]{0}', space=sflag, size = 0x4, scoped, tag = 'scoped memory for _simple_nn_forward.1']
    %8 = vsyncpa [#allocation3], 0
    %9 = vsyncpa [#allocation5], 0
    // Predicated region
    $region2: #{_simple_nn_forward.1} parent=1 // pred_check
      _
    $region3: #{_simple_nn_forward.1} parent=1 // pred_check_branch
      %11 = sbr.rel (0) target = $region5
    $region4: #{_simple_nn_forward.1} parent=1 // pred_region
      %s13 = ssub.s32 64, 64
      %14 = vsyncadd [#allocation3], %s13
      %s16 = sshll.u32 %s0, 4
      %s17 = int_to_ptr.vmem [resolvable:$true] %s16
      %19 = dma.vmem_to_smem %s17, 64, [#allocation2], [#allocation3]
    $region5: #{_simple_nn_forward.1} parent=1 // pred_fallthru
      _
    // Predicated region
    $region6: #{_simple_nn_forward.1} parent=1 // pred_check
      _
    $region7: #{_simple_nn_forward.1} parent=1 // pred_check_branch
      %21 = sbr.rel (0) target = $region9
    $region8: #{_simple_nn_forward.1} parent=1 // pred_region
      %s23 = ssub.s32 16, 16
      %24 = vsyncadd [#allocation5], %s23
      %s26 = sshll.u32 %s1, 4
      %s27 = int_to_ptr.vmem [resolvable:$true] %s26
      %29 = dma.vmem_to_smem %s27, 16, [#allocation4], [#allocation5]
    $region9: #{_simple_nn_forward.1} parent=1 // pred_fallthru
      _
    // Predicated region
    $region10: #{_simple_nn_forward.1} parent=1 // pred_check
      _
    $region11: #{_simple_nn_forward.1} parent=1 // pred_check_branch
      %31 = sbr.rel (0) target = $region13
    $region12: #{_simple_nn_forward.1} parent=1 // pred_region
      _
    $region13: #{_simple_nn_forward.1} parent=1 // pred_fallthru
      _
    // Predicated region
    $region14: #{_simple_nn_forward.1} parent=1 // pred_check
      _
    $region15: #{_simple_nn_forward.1} parent=1 // pred_check_branch
      %33 = sbr.rel (0) target = $region17
    $region16: #{_simple_nn_forward.1} parent=1 // pred_region
      %34 = dma.done [#allocation3], 64
    $region17: #{_simple_nn_forward.1} parent=1 // pred_fallthru
      _
    // Predicated region
    $region18: #{_simple_nn_forward.1} parent=1 // pred_check
      _
    $region19: #{_simple_nn_forward.1} parent=1 // pred_check_branch
      %36 = sbr.rel (0) target = $region21
    $region20: #{_simple_nn_forward.1} parent=1 // pred_region
      %37 = dma.done [#allocation5], 16
    $region21: #{_simple_nn_forward.1} parent=1 // pred_fallthru
      _
    %38 = sfence
    %v39 = vld [vmem:[%s2] sm:$0xff]
    %v40 = vld [vmem:[%s2 + $0x8] sm:$0xff]
    %v41 = vld [vmem:[%s2 + $0x10] sm:$0xff]
    %s42 = sld [smem:[#allocation2]]
    %v43 = vstv %s42
    %v44 = vmul.f32 %v43, %v39
    %s45 = sld [smem:[#allocation2 + $0x1]]
    %v46 = vstv %s45
    %v47 = vmul.f32 %v46, %v40
    %v48 = vadd.f32 %v44, %v47
    %s49 = sld [smem:[#allocation2 + $0x2]]
    %v50 = vstv %s49
    %v51 = vmul.f32 %v50, %v41
    %v52 = vadd.f32 %v48, %v51
    %v53 = vmax.f32 %v52, 0.0
    %s54 = sld [smem:[#allocation4]]
    %v55 = vstv %s54
    %v56 = vmul.f32 %v55, %v53
    %s57 = sld [smem:[#allocation2 + $0x80]]
    %v58 = vstv %s57
    %v59 = vmul.f32 %v58, %v39
    %s60 = sld [smem:[#allocation2 + $0x81]]
    %v61 = vstv %s60
    %v62 = vmul.f32 %v61, %v40
    %v63 = vadd.f32 %v59, %v62
    %s64 = sld [smem:[#allocation2 + $0x82]]
    %v65 = vstv %s64
    %v66 = vmul.f32 %v65, %v41
    %v67 = vadd.f32 %v63, %v66
    %v68 = vmax.f32 %v67, 0.0
    %s69 = sld [smem:[#allocation4 + $0x1]]
    %v70 = vstv %s69
    %v71 = vmul.f32 %v70, %v68
    %v72 = vadd.f32 %v56, %v71
    %s73 = sld [smem:[#allocation2 + $0x100]]
    %v74 = vstv %s73
    %v75 = vmul.f32 %v74, %v39
    %s76 = sld [smem:[#allocation2 + $0x101]]
    %v77 = vstv %s76
    %v78 = vmul.f32 %v77, %v40
    %v79 = vadd.f32 %v75, %v78
    %s80 = sld [smem:[#allocation2 + $0x102]]
    %v81 = vstv %s80
    %v82 = vmul.f32 %v81, %v41
    %v83 = vadd.f32 %v79, %v82
    %v84 = vmax.f32 %v83, 0.0
    %s85 = sld [smem:[#allocation4 + $0x2]]
    %v86 = vstv %s85
    %v87 = vmul.f32 %v86, %v84
    %v88 = vadd.f32 %v72, %v87
    %89 = vst [vmem:[%s3] sm:$0xff] %v88
    // Predicated region
    $region22: #{_simple_nn_forward.1} parent=1 // pred_check
      _
    $region23: #{_simple_nn_forward.1} parent=1 // pred_check_branch
      %91 = sbr.rel (0) target = $region25
    $region24: #{_simple_nn_forward.1} parent=1 // pred_region
      _
    $region25: #{_simple_nn_forward.1} parent=1 // pred_fallthru
      _
    // Predicated region
    $region26: #{_simple_nn_forward.1} parent=1 // pred_check
      _
    $region27: #{_simple_nn_forward.1} parent=1 // pred_check_branch
      %93 = sbr.rel (0) target = $region29
    $region28: #{_simple_nn_forward.1} parent=1 // pred_region
      _
    $region29: #{_simple_nn_forward.1} parent=1 // pred_fallthru
      _
    %94 = vsyncpa [#allocation3], 1
    %95 = vsyncpa [#allocation5], 1

</llo_original>
